<compile_context>
chip_gen: v7x
topology: tpu7x:2x2x1
jax: 0.10.0
libtpu: 0.0.40
codegen_flags: <defaults>
</compile_context>

<pallas_src>
import jax
import jax.numpy as jnp
from jax.experimental import pallas as pl
from jax.experimental.pallas import tpu as pltpu

MAX_LEN = 2056 * 8                       # one_d() max_len
VMEM_LIMIT_BYTES = 48 * 1024 * 1024      # explicit scoped-VMEM limit (fits v5e/v6e/v7x)
BLOCK_BUDGET_BYTES = 28 * 1024 * 1024    # per-step working-set target for tile sizing


def _one_d(idx, d=64):
    """one_d(idx, d): [sin(idx*f_k) | cos(idx*f_k)], f_k = pi / max_len**(2k/d)."""
    K = jnp.arange(d // 2, dtype=jnp.float32)
    ang = idx[..., None].astype(jnp.float32) * (jnp.pi / (MAX_LEN ** (2.0 * K / d)))
    return jnp.concatenate([jnp.sin(ang), jnp.cos(ang)], axis=-1)


def _ceil_to(x, m):
    return ((int(x) + m - 1) // m) * m


def _split_axis(total, target, mult=8):
    """Pick a block size (multiple of `mult`, <= ~target) that tiles `total`
    with minimal padding. Returns (block, padded_total)."""
    total_m = _ceil_to(max(int(total), 1), mult)
    target = max(mult, min(int(target), total_m))
    n_blocks = -(-total_m // target)
    blk = _ceil_to(-(-total_m // n_blocks), mult)
    return blk, n_blocks * blk


# ---------------------------------------------------------------------------
# Kernel 1: m[n, l] = msalinear(msa[n, l]) + shared[l]
#   shared = slinear(seq) + poslinear2(one_d(idx,64)) + lm_layer_s(s_lm) + bmsa
# grid over (blocks of TN MSA rows, blocks of TL sequence positions).
# ---------------------------------------------------------------------------
def m_kernel(msa_ref, shared_ref, wmsa_ref, out_ref):
    TN, TL, Dm = msa_ref.shape
    m_dim = out_ref.shape[-1]
    rows = jnp.dot(msa_ref[...].reshape(TN * TL, Dm), wmsa_ref[...],
                   preferred_element_type=jnp.float32)
    out_ref[...] = (rows.reshape(TN, TL, m_dim)
                    + shared_ref[...][None, :, :]).astype(out_ref.dtype)


# ---------------------------------------------------------------------------
# Kernel 2: z[i, j] = sq[j] + sk[i] + poslinear(one_d(idx[i]-idx[j], 64))
#                     + lm_layer_z(z_lm[i, j])
# grid over (blocks of TI rows of i, blocks of TJ columns of j).
# sq carries bq+bpos+blz; rel is computed in-kernel; single f32 accumulator.
# ---------------------------------------------------------------------------
def z_kernel(sq_ref, sk_ref, idxi_ref, idxj_ref, freqs_ref, zlm_ref,
             wpos_s_ref, wpos_c_ref, wlz_ref, out_ref):
    TI, TJ, _ = zlm_ref.shape
    z_dim = out_ref.shape[-1]

    # LM pair term first (dominant HBM read), f32 MXU accumulation.
    acc = jnp.dot(zlm_ref[...].reshape(TI * TJ, -1), wlz_ref[...],
                  preferred_element_type=jnp.float32)

    # Relative positional term: sin|cos concat -> two split matmuls.
    rel = (idxi_ref[...].reshape(TI, 1, 1)
           - idxj_ref[...].reshape(1, TJ, 1))                       # (TI, TJ, 1)
    ang = (rel * freqs_ref[...]).reshape(TI * TJ, -1)               # (TI*TJ, 32)
    acc = acc + jnp.dot(jnp.sin(ang), wpos_s_ref[...],
                        preferred_element_type=jnp.float32)
    acc = acc + jnp.dot(jnp.cos(ang), wpos_c_ref[...],
                        preferred_element_type=jnp.float32)

    out_ref[...] = (acc.reshape(TI, TJ, z_dim)
                    + sq_ref[...][None, :, :]
                    + sk_ref[...][:, None, :]).astype(out_ref.dtype)


def pre_msa_forward(seq, msa, idx, s_lm, z_lm, params, *,
                    vmem_limit_bytes=VMEM_LIMIT_BYTES,
                    block_budget_bytes=BLOCK_BUDGET_BYTES):
    N, L, Dm = msa.shape
    m_dim = params["Wmsa"].shape[-1]
    z_dim = params["Wq"].shape[-1]
    lm_z_dim = z_lm.shape[-1]

    idx_f = idx.astype(jnp.float32)                                  # (L,)
    k32 = jnp.arange(32, dtype=jnp.float32)
    freqs = (jnp.pi / (MAX_LEN ** (2.0 * k32 / 64.0))).reshape(1, 1, 32)

    # ---- hoisted L-only terms (tiny matmuls; plain XLA), biases folded -----
    shared = (seq @ params["Ws"] + params["bs"]
              + _one_d(idx_f, 64) @ params["Wp2"] + params["bp2"]
              + s_lm @ params["Wls"] + params["bls"]
              + params["bmsa"])                                      # (L, m_dim)
    sq = (seq @ params["Wq"] + params["bq"]
          + params["bpos"] + params["blz"])                          # (L, z_dim)
    sk = seq @ params["Wk"] + params["bk"]                           # (L, z_dim)

    # ---- m = msalinear(msa) + shared ---------------------------------------
    tn = max(1, min(8, N))
    Np = _ceil_to(N, tn)
    # per-(n,l) VMEM bytes: msa (dbl-buf + reshape copy) + out (dbl-buf) + rows,
    # last dims lane-padded to 128.
    per_elem_m = 4 * (3 * _ceil_to(Dm, 128) + 3 * _ceil_to(m_dim, 128))
    tl, Lm = _split_axis(L, block_budget_bytes // (tn * per_elem_m), 8)
    # keep both TensorCores busy even when N is tiny
    if (Np // tn) * (Lm // tl) < 2 and Lm > 8:
        tl, Lm = _split_axis(L, max(8, tl // 2), 8)

    msa_p = jnp.pad(msa, ((0, Np - N), (0, Lm - L), (0, 0)))
    shared_p = jnp.pad(shared, ((0, Lm - L), (0, 0)))

    m = pl.pallas_call(
        m_kernel,
        out_shape=jax.ShapeDtypeStruct((Np, Lm, m_dim), jnp.float32),
        grid=(Np // tn, Lm // tl),
        in_specs=[
            pl.BlockSpec((tn, tl, Dm), lambda n, l: (n, l, 0)),
            pl.BlockSpec((tl, m_dim), lambda n, l: (l, 0)),
            pl.BlockSpec((Dm, m_dim), lambda n, l: (0, 0)),
        ],
        out_specs=pl.BlockSpec((tn, tl, m_dim), lambda n, l: (n, l, 0)),
        compiler_params=pltpu.CompilerParams(
            dimension_semantics=("parallel", "parallel"),
            vmem_limit_bytes=vmem_limit_bytes),
    )(msa_p, shared_p, params["Wmsa"])
    m = m[:N, :L]

    # ---- z = sq[None] + sk[:,None] + pos(rel) + lm_layer_z(z_lm) -----------
    ti, Li = _split_axis(L, 8, 8)          # small i block -> well-populated grid
    # per-(i,j) VMEM bytes: zlm (dbl-buf) + out (dbl-buf) + acc + ang/sin/cos,
    # last dims lane-padded to 128.
    per_elem_z = 4 * (2 * _ceil_to(lm_z_dim, 128)
                      + 3 * _ceil_to(z_dim, 128) + 3 * 128)
    tj, Lj = _split_axis(L, block_budget_bytes // (ti * per_elem_z), 8)

    sk_p = jnp.pad(sk, ((0, Li - L), (0, 0)))
    sq_p = jnp.pad(sq, ((0, Lj - L), (0, 0)))
    idx_i = jnp.pad(idx_f, (0, Li - L)).reshape(Li, 1)
    idx_j = jnp.pad(idx_f, (0, Lj - L)).reshape(Lj, 1)
    zlm_p = jnp.pad(z_lm, ((0, Li - L), (0, Lj - L), (0, 0)))

    z = pl.pallas_call(
        z_kernel,
        out_shape=jax.ShapeDtypeStruct((Li, Lj, z_dim), jnp.float32),
        grid=(Li // ti, Lj // tj),
        in_specs=[
            pl.BlockSpec((tj, z_dim), lambda i, j: (j, 0)),            # sq (+biases)
            pl.BlockSpec((ti, z_dim), lambda i, j: (i, 0)),            # sk
            pl.BlockSpec((ti, 1), lambda i, j: (i, 0)),                # idx rows (i)
            pl.BlockSpec((tj, 1), lambda i, j: (j, 0)),                # idx cols (j)
            pl.BlockSpec((1, 1, 32), lambda i, j: (0, 0, 0)),          # freqs
            pl.BlockSpec((ti, tj, lm_z_dim), lambda i, j: (i, j, 0)),  # z_lm block
            pl.BlockSpec((32, z_dim), lambda i, j: (0, 0)),            # Wpos[:32]
            pl.BlockSpec((32, z_dim), lambda i, j: (0, 0)),            # Wpos[32:]
            pl.BlockSpec((lm_z_dim, z_dim), lambda i, j: (0, 0)),      # Wlz
        ],
        out_specs=pl.BlockSpec((ti, tj, z_dim), lambda i, j: (i, j, 0)),
        compiler_params=pltpu.CompilerParams(
            dimension_semantics=("parallel", "parallel"),
            vmem_limit_bytes=vmem_limit_bytes),
    )(sq_p, sk_p, idx_i, idx_j, freqs, zlm_p,
      params["Wpos"][:32], params["Wpos"][32:], params["Wlz"])
    z = z[:L, :L]

    return m, z


# ---------------------------------------------------------------------------
# Pure-JAX reference (mirrors the PyTorch forward) for a correctness check.
# ---------------------------------------------------------------------------
def pre_msa_ref(seq, msa, idx, s_lm, z_lm, p):
    idx_f = idx.astype(jnp.float32)
    s = seq @ p["Ws"] + p["bs"]
    m = msa @ p["Wmsa"] + p["bmsa"]
    pfeat = _one_d(idx_f, 64) @ p["Wp2"] + p["bp2"]
    m = m + s[None] + pfeat[None] + (s_lm @ p["Wls"] + p["bls"])[None]
    sq = seq @ p["Wq"] + p["bq"]
    sk = seq @ p["Wk"] + p["bk"]
    z = sq[None, :, :] + sk[:, None, :]
    rel = idx_f[:, None] - idx_f[None, :]
    z = z + _one_d(rel, 64) @ p["Wpos"] + p["bpos"]
    z = z + z_lm @ p["Wlz"] + p["blz"]
    return m, z


def _linear_init(key, din, dout):
    k1, k2 = jax.random.split(key)
    w = jax.random.normal(k1, (din, dout), jnp.float32) / jnp.sqrt(float(din))
    b = 0.01 * jax.random.normal(k2, (1, dout), jnp.float32)
    return w, b


if __name__ == "__main__":
    SEQ_DIM, MSA_DIM, M_DIM, Z_DIM = 8, 6, 32, 16
    N, L = 3, 8

    key = jax.random.PRNGKey(0)
    keys = jax.random.split(key, 16)

    params = {}
    params["Wmsa"], params["bmsa"] = _linear_init(keys[0], MSA_DIM, M_DIM)
    params["Wq"],   params["bq"]   = _linear_init(keys[1], SEQ_DIM, Z_DIM)
    params["Wk"],   params["bk"]   = _linear_init(keys[2], SEQ_DIM, Z_DIM)
    params["Ws"],   params["bs"]   = _linear_init(keys[3], SEQ_DIM, M_DIM)
    params["Wpos"], params["bpos"] = _linear_init(keys[4], 64, Z_DIM)
    params["Wp2"],  params["bp2"]  = _linear_init(keys[5], 64, M_DIM)
    params["Wls"],  params["bls"]  = _linear_init(keys[6], 512, M_DIM)
    params["Wlz"],  params["blz"]  = _linear_init(keys[7], 128, Z_DIM)

    seq = jax.random.normal(keys[8], (L, SEQ_DIM), jnp.float32)
    msa = jax.random.normal(keys[9], (N, L, MSA_DIM), jnp.float32)
    idx = jnp.arange(L, dtype=jnp.int32)
    s_lm = jax.random.normal(keys[10], (L, 512), jnp.float32)
    z_lm = jax.random.normal(keys[11], (L, L, 128), jnp.float32)

    m_out, z_out = pre_msa_forward(seq, msa, idx, s_lm, z_lm, params)
    jax.block_until_ready((m_out, z_out))

    m_ref, z_ref = pre_msa_ref(seq, msa, idx, s_lm, z_lm, params)
    assert m_out.shape == (N, L, M_DIM) and z_out.shape == (L, L, Z_DIM)
    assert jnp.allclose(m_out, m_ref, atol=1e-4, rtol=1e-4)
    assert jnp.allclose(z_out, z_ref, atol=1e-4, rtol=1e-4)

    print("KERNEL_OK")
</pallas_src>

<mosaic_0001>
module attributes {stable_mosaic.version = 11 : i64} {
  func.func @m_kernel(%arg0: i32, %arg1: i32, %arg2: memref<3x8x6xf32, #tpu.memory_space<vmem>>, %arg3: memref<8x32xf32, #tpu.memory_space<vmem>>, %arg4: memref<6x32xf32, #tpu.memory_space<vmem>>, %arg5: memref<3x8x32xf32, #tpu.memory_space<vmem>>) attributes {dimension_semantics = [#tpu.dimension_semantics<parallel>, #tpu.dimension_semantics<parallel>], iteration_bounds = array<i64: 1, 1>, scalar_prefetch = 0 : i64, scratch_operands = 0 : i64, tpu.core_type = #tpu.core_type<tc>, window_params = [{transform_indices = @transform_0, window_bounds = array<i64: 3, 8, 6>}, {transform_indices = @transform_1, window_bounds = array<i64: 8, 32>}, {pipeline_mode = #tpu.pipeline_mode<synchronous>, transform_indices = @transform_2, window_bounds = array<i64: 6, 32>}, {transform_indices = @transform_3, window_bounds = array<i64: 3, 8, 32>}]} {
    %c0 = arith.constant 0 : index
    %c0_0 = arith.constant 0 : index
    %c0_1 = arith.constant 0 : index
    %0 = vector.load %arg2[%c0, %c0_0, %c0_1] : memref<3x8x6xf32, #tpu.memory_space<vmem>>, vector<3x8x6xf32>
    %1 = vector.shape_cast %0 : vector<3x8x6xf32> to vector<24x6xf32>
    %c0_2 = arith.constant 0 : index
    %c0_3 = arith.constant 0 : index
    %2 = vector.load %arg4[%c0_2, %c0_3] : memref<6x32xf32, #tpu.memory_space<vmem>>, vector<6x32xf32>
    %cst = arith.constant dense<0.000000e+00> : vector<24x32xf32>
    %3 = tpu.matmul %1, %2, %cst {dimension_numbers = #tpu.dot_dimension_numbers<[1], [0], [0], [1], [0, 0, 1, 1], [], []>} : vector<24x6xf32>, vector<6x32xf32>, vector<24x32xf32> -> vector<24x32xf32>
    %4 = vector.shape_cast %3 : vector<24x32xf32> to vector<3x8x32xf32>
    %c0_4 = arith.constant 0 : index
    %c0_5 = arith.constant 0 : index
    %5 = vector.load %arg3[%c0_4, %c0_5] : memref<8x32xf32, #tpu.memory_space<vmem>>, vector<8x32xf32>
    %6 = vector.shape_cast %5 : vector<8x32xf32> to vector<1x8x32xf32>
    %7 = vector.broadcast %6 : vector<1x8x32xf32> to vector<3x8x32xf32>
    %8 = arith.addf %4, %7 : vector<3x8x32xf32>
    %c0_6 = arith.constant 0 : index
    %c0_7 = arith.constant 0 : index
    %c0_8 = arith.constant 0 : index
    %9 = vector.load %arg5[%c0_6, %c0_7, %c0_8] : memref<3x8x32xf32, #tpu.memory_space<vmem>>, vector<3x8x32xf32>
    tpu.vector_store %arg5[%c0_6, %c0_7, %c0_8], %8 {strides = array<i32>} : memref<3x8x32xf32, #tpu.memory_space<vmem>>, vector<3x8x32xf32>,
    return
  }
  func.func @transform_0(%arg0: i32, %arg1: i32) -> (i32, i32, i32) {
    %c0_i32 = arith.constant 0 : i32
    %c0_i32_0 = arith.constant 0 : i32
    return %arg0, %arg1, %c0_i32 : i32, i32, i32
  }
  func.func @transform_1(%arg0: i32, %arg1: i32) -> (i32, i32) {
    %c0_i32 = arith.constant 0 : i32
    %c0_i32_0 = arith.constant 0 : i32
    return %arg1, %c0_i32 : i32, i32
  }
  func.func @transform_2(%arg0: i32, %arg1: i32) -> (i32, i32) {
    %c0_i32 = arith.constant 0 : i32
    %c0_i32_0 = arith.constant 0 : i32
    %c0_i32_1 = arith.constant 0 : i32
    return %c0_i32, %c0_i32_0 : i32, i32
  }
  func.func @transform_3(%arg0: i32, %arg1: i32) -> (i32, i32, i32) {
    %c0_i32 = arith.constant 0 : i32
    %c0_i32_0 = arith.constant 0 : i32
    return %arg0, %arg1, %c0_i32 : i32, i32, i32
  }
}

</mosaic_0001>

<llo_original>
// kernel: tpu_custom_call.1
$region0: #{tpu_custom_call.1}
  #allocation0 [shape = 'u32[]', space=smem, size = 0x4, offset = 0x4, fixed_abs, tag = 'smem constant byte address 0x4 - core index']
  #allocation1 [shape = 'u32[144,128]{1,0:T(1,128)}', space=vmem, size = 0x12000, scoped, tag = 'internal scratch']
  %s0 = inlined_call_operand.hbm [shape: f32[3,8,6], index: 0, kind: input, shape index: {}]
  %s1 = inlined_call_operand.hbm [shape: f32[8,32], index: 1, kind: input, shape index: {}]
  %s2 = inlined_call_operand.hbm [shape: f32[6,32], index: 2, kind: input, shape index: {}]
  %s3 = inlined_call_operand.hbm [shape: f32[3,8,32], index: 3, kind: output, shape index: {}]
  %s4 = sld [smem:[#allocation0]]
  $region34: #{tpu_custom_call.1} parent=0
    _
  %s6 = ssub.s32 1, %s4
  %s7 = scalar_select 0, %s6, %s4
  $region1: #{tpu_custom_call.1} parent=0
    #allocation2 [shape = 'u8[12288]{0}', space=vmem, size = 0x3000, scoped, tag = 'input window, operand 0, single buffered']
    #allocation3 [shape = 's32[1]{0}', space=sflag, size = 0x4, scoped, tag = 'scoped memory for tpu_custom_call.1']
    #allocation4 [shape = 's32[1]{0}', space=sflag, size = 0x4, scoped, tag = 'scoped memory for tpu_custom_call.1']
    #allocation5 [shape = 'u8[4096]{0}', space=vmem, size = 0x1000, scoped, tag = 'input window, operand 1, single buffered']
    #allocation6 [shape = 's32[1]{0}', space=sflag, size = 0x4, scoped, tag = 'scoped memory for tpu_custom_call.1']
    #allocation7 [shape = 'u8[4096]{0}', space=vmem, size = 0x1000, scoped, tag = 'input window, operand 2, single buffered']
    #allocation8 [shape = 'u8[12288]{0}', space=vmem, size = 0x3000, scoped, tag = 'output window, operand 0, single buffered']
    %8 = vsyncpa [#allocation3], 0
    %9 = vsyncpa [#allocation6], 0
    %10 = vsyncpa [#allocation4], 0
    // Predicated region
    $region2: #{tpu_custom_call.1} parent=1 // pred_check
      _
    $region3: #{tpu_custom_call.1} parent=1 // pred_check_branch
      %12 = sbr.rel (0) target = $region5
    $region4: #{tpu_custom_call.1} parent=1 // pred_region
      %s14 = ssub.s32 384, 384
      %15 = vsyncadd [#allocation3], %s14
      %s16 = sshll.u32 [#allocation2], 4
      %s17 = int_to_ptr.vmem [resolvable:$true] %s16
      %22 = dma.hbm_to_vmem [thread:$0]  %s0, 384, %s17, [#allocation3], 128, 128, 8
    $region5: #{tpu_custom_call.1} parent=1 // pred_fallthru
      _
    // Predicated region
    $region6: #{tpu_custom_call.1} parent=1 // pred_check
      _
    $region7: #{tpu_custom_call.1} parent=1 // pred_check_branch
      %24 = sbr.rel (0) target = $region9
    $region8: #{tpu_custom_call.1} parent=1 // pred_region
      %s26 = ssub.s32 128, 128
      %27 = vsyncadd [#allocation6], %s26
      %s29 = sshll.u32 [#allocation5], 4
      %s30 = int_to_ptr.vmem [resolvable:$true] %s29
      %32 = dma.hbm_to_vmem [thread:$0]  %s1, 128, %s30, [#allocation6]
    $region9: #{tpu_custom_call.1} parent=1 // pred_fallthru
      _
    // Predicated region
    $region10: #{tpu_custom_call.1} parent=1 // pred_check
      _
    $region11: #{tpu_custom_call.1} parent=1 // pred_check_branch
      %34 = sbr.rel (0) target = $region13
    $region12: #{tpu_custom_call.1} parent=1 // pred_region
      %s36 = ssub.s32 128, 128
      %37 = vsyncadd [#allocation6], %s36
      %s39 = sshll.u32 [#allocation7], 4
      %s40 = int_to_ptr.vmem [resolvable:$true] %s39
      %42 = dma.hbm_to_vmem [thread:$0]  %s2, 128, %s40, [#allocation6]
    $region13: #{tpu_custom_call.1} parent=1 // pred_fallthru
      _
    // Predicated region
    $region14: #{tpu_custom_call.1} parent=1 // pred_check
      _
    $region15: #{tpu_custom_call.1} parent=1 // pred_check_branch
      %44 = sbr.rel (0) target = $region17
    $region16: #{tpu_custom_call.1} parent=1 // pred_region
      %45 = dma.done [#allocation3], 384
    $region17: #{tpu_custom_call.1} parent=1 // pred_fallthru
      _
    // Predicated region
    $region18: #{tpu_custom_call.1} parent=1 // pred_check
      _
    $region19: #{tpu_custom_call.1} parent=1 // pred_check_branch
      %47 = sbr.rel (0) target = $region21
    $region20: #{tpu_custom_call.1} parent=1 // pred_region
      %48 = dma.done [#allocation6], 128
    $region21: #{tpu_custom_call.1} parent=1 // pred_fallthru
      _
    // Predicated region
    $region22: #{tpu_custom_call.1} parent=1 // pred_check
      _
    $region23: #{tpu_custom_call.1} parent=1 // pred_check_branch
      %50 = sbr.rel (0) target = $region25
    $region24: #{tpu_custom_call.1} parent=1 // pred_region
      %51 = dma.done [#allocation6], 128
    $region25: #{tpu_custom_call.1} parent=1 // pred_fallthru
      _
    %v52 = vld [vmem:[#allocation2] sm:$0xff]
    %v53 = vld [vmem:[#allocation2 + $0x8] sm:$0xff]
    %v54 = vld [vmem:[#allocation2 + $0x10] sm:$0xff]
    %v55 = vld [vmem:[#allocation7] sm:$0x3f]
    %vm56 = vcmask 48128
    %v58 = vsel %vm56, %v52, 0
    %v61 = vsel %vm56, %v53, 0
    %v64 = vsel %vm56, %v54, 0
    %vm66 = vcmask 1045504
    %v68 = vsel %vm66, %v55, 0
    %70 = vmatprep.subr.mxu0 0.0
    %71 = vmatpush1.msra.mxu0 %v68
    %72 = vmatprep.subr.mxu0 0.0
    %73 = vmatpush1.msra.mxu0 0.0
    %74 = vmatprep.subr.mxu0 0.0
    %75 = vmatpush1.msra.mxu0 0.0
    %76 = vmatprep.subr.mxu0 0.0
    %77 = vmatpush1.msra.mxu0 0.0
    %78 = vmatprep.subr.mxu0 0.0
    %79 = vmatpush1.msra.mxu0 0.0
    %80 = vmatprep.subr.mxu0 0.0
    %81 = vmatpush1.msra.mxu0 0.0
    %82 = vmatprep.subr.mxu0 0.0
    %83 = vmatpush1.msra.mxu0 0.0
    %84 = vmatprep.subr.mxu0 0.0
    %85 = vmatpush1.msra.mxu0 0.0
    %86 = vmatprep.subr.mxu0 0.0
    %87 = vmatpush1.msra.mxu0 0.0
    %88 = vmatprep.subr.mxu0 0.0
    %89 = vmatpush1.msra.mxu0 0.0
    %90 = vmatprep.subr.mxu0 0.0
    %91 = vmatpush1.msra.mxu0 0.0
    %92 = vmatprep.subr.mxu0 0.0
    %93 = vmatpush1.msra.mxu0 0.0
    %94 = vmatprep.subr.mxu0 0.0
    %95 = vmatpush1.msra.mxu0 0.0
    %96 = vmatprep.subr.mxu0 0.0
    %97 = vmatpush1.msra.mxu0 0.0
    %98 = vmatprep.subr.mxu0 0.0
    %99 = vmatpush1.msra.mxu0 0.0
    %100 = vmatprep.subr.mxu0 0.0
    %101 = vmatpush1.msra.mxu0 0.0
    %102 = vmatprep.subr.mxu0 0.0
    %103 = vmatpush1.msra.mxu0 0.0
    %104 = vmatprep.subr.mxu0 0.0
    %105 = vmatpush1.msra.mxu0 0.0
    %106 = vmatprep.subr.mxu0 0.0
    %107 = vmatpush1.msra.mxu0 0.0
    %108 = vmatprep.subr.mxu0 0.0
    %109 = vmatpush1.msra.mxu0 0.0
    %110 = vmatprep.subr.mxu0 0.0
    %111 = vmatpush1.msra.mxu0 0.0
    %112 = vmatprep.subr.mxu0 0.0
    %113 = vmatpush1.msra.mxu0 0.0
    %114 = vmatprep.subr.mxu0 0.0
    %115 = vmatpush1.msra.mxu0 0.0
    %116 = vmatprep.subr.mxu0 0.0
    %117 = vmatpush1.msra.mxu0 0.0
    %118 = vmatprep.subr.mxu0 0.0
    %119 = vmatpush1.msra.mxu0 0.0
    %120 = vmatprep.subr.mxu0 0.0
    %121 = vmatpush1.msra.mxu0 0.0
    %122 = vmatprep.subr.mxu0 0.0
    %123 = vmatpush1.msra.mxu0 0.0
    %124 = vmatprep.subr.mxu0 0.0
    %125 = vmatpush1.msra.mxu0 0.0
    %126 = vmatprep.subr.mxu0 0.0
    %127 = vmatpush1.msra.mxu0 0.0
    %128 = vmatprep.subr.mxu0 0.0
    %129 = vmatpush1.msra.mxu0 0.0
    %130 = vmatprep.subr.mxu0 0.0
    %131 = vmatpush1.msra.mxu0 0.0
    %132 = vmatprep.subr.mxu0 0.0
    %133 = vmatpush1.msra.mxu0 0.0
    %134 = vmatprep.mubr.f32.mxu0 0.0
    %135 = vmatmul.mubr.f32.gmra.mrb[0].mxu0 %v58
    %v136 = vpop.f32.mrb[0].mxu0
    %v137 = vadd.f32 0.0, %v136
    %v138 = vpop.f32.mrb[0].mxu0
    %139 = vmatprep.mubr.f32.mxu0 0.0
    %140 = vmatmul.mubr.f32.gmra.mrb[0].mxu0 %v61
    %v141 = vpop.f32.mrb[0].mxu0
    %v142 = vadd.f32 0.0, %v141
    %v143 = vpop.f32.mrb[0].mxu0
    %144 = vmatprep.mubr.f32.mxu0 0.0
    %145 = vmatmul.mubr.f32.gmra.mrb[0].mxu0 %v64
    %v146 = vpop.f32.mrb[0].mxu0
    %v147 = vadd.f32 0.0, %v146
    %v148 = vpop.f32.mrb[0].mxu0
    %149 = vdwg.mxu0
    %v150 = vld [vmem:[#allocation5] sm:$0xff]
    %v151 = vadd.f32 %v137, %v150
    %v152 = vadd.f32 %v142, %v150
    %v153 = vadd.f32 %v147, %v150
    %vm154 = vcmask 261120
    %155 = vst.msk [vmem:[#allocation8] sm:$0xff] %vm154, %v151
    %156 = vst.msk [vmem:[#allocation8 + $0x8] sm:$0xff] %vm154, %v152
    %157 = vst.msk [vmem:[#allocation8 + $0x10] sm:$0xff] %vm154, %v153
    // Predicated region
    $region26: #{tpu_custom_call.1} parent=1 // pred_check
      _
    $region27: #{tpu_custom_call.1} parent=1 // pred_check_branch
      %159 = sbr.rel (0) target = $region29
    $region28: #{tpu_custom_call.1} parent=1 // pred_region
      %s161 = ssub.s32 384, 384
      %162 = vsyncadd [#allocation4], %s161
      %s163 = sshll.u32 [#allocation8], 4
      %s164 = int_to_ptr.vmem [resolvable:$true] %s163
      %169 = dma.vmem_to_hbm [thread:$0]  %s164, 384, %s3, [#allocation4], 128, 128, 8
    $region29: #{tpu_custom_call.1} parent=1 // pred_fallthru
      _
    // Predicated region
    $region30: #{tpu_custom_call.1} parent=1 // pred_check
      _
    $region31: #{tpu_custom_call.1} parent=1 // pred_check_branch
      %171 = sbr.rel (0) target = $region33
    $region32: #{tpu_custom_call.1} parent=1 // pred_region
      %172 = dma.done [#allocation4], 384
    $region33: #{tpu_custom_call.1} parent=1 // pred_fallthru
      _
    %173 = vsyncpa [#allocation3], 1
    %174 = vsyncpa [#allocation6], 1
    %175 = vsyncpa [#allocation4], 1

</llo_original>
